<compile_context>
chip_gen: v6e
topology: v6e:2x2x1
jax: 0.10.0
libtpu: 0.0.40
codegen_flags: <defaults>
</compile_context>

<pallas_src>
import functools

import jax
import jax.numpy as jnp
from jax.experimental import pallas as pl
from jax.experimental.pallas import tpu as pltpu


def _round_up(x: int, m: int) -> int:
    return (x + m - 1) // m * m


def _cdiv(a: int, b: int) -> int:
    return (a + b - 1) // b


def _choose_tiles(n: int, c: int, itemsize: int, budget_bytes: int):
    """Pick (tm, tc) so one logits tile is ~budget_bytes and layout-legal."""
    # Minimum sublane tile per dtype packing (f32: 8, bf16: 16, int8/fp8: 32).
    sub = 8 if itemsize >= 4 else (16 if itemsize == 2 else 32)
    if sub * c * itemsize <= budget_bytes:
        tc = c  # whole class axis in one block (full-dim block: no 128 pad needed)
    else:
        tc = max(128, (budget_bytes // (sub * itemsize)) // 128 * 128)
        if tc >= c:  # defensive: never ask for a class block wider than C
            tc = c
    # Rows per tile: fill the budget; generous cap (the old 1024 cap starved
    # the tile for small C); never exceed one (padded) pass over n.
    tm = max(sub, (budget_bytes // (tc * itemsize)) // sub * sub)
    tm = min(tm, 8192)
    tm = min(tm, _round_up(n, sub))
    # v7x megacore: make sure the "parallel" row axis has >= 2 blocks when the
    # batch is large enough to split (no-op perf-wise on v5e/v6e).
    if n > sub and _cdiv(n, tm) < 2:
        tm = max(sub, _round_up(_cdiv(n, 2), sub))
    return tm, tc


def _identity_loss_kernel(logits_ref, y_ref, out_ref, *, tc: int,
                          single_c_block: bool):
    logits = logits_ref[...]                                   # (TM, TC)
    y = y_ref[...]                                             # (TM, 1) int32

    if single_c_block:
        # Whole class axis in one tile: write the row-gather directly (no
        # zero-init, no resident-block read-modify-write).
        class_ids = jax.lax.broadcasted_iota(jnp.int32, logits.shape, 1)
        picked = jnp.where(class_ids == y, logits, jnp.zeros_like(logits))
        out_ref[...] = jnp.sum(picked, axis=1, keepdims=True)  # (TM, 1)
    else:
        k = pl.program_id(1)  # class-block index (innermost, "arbitrary" axis)

        @pl.when(k == 0)
        def _():
            out_ref[...] = jnp.zeros_like(out_ref)

        class_ids = k * tc + jax.lax.broadcasted_iota(jnp.int32, logits.shape, 1)
        picked = jnp.where(class_ids == y, logits, jnp.zeros_like(logits))
        # Exact even in bf16: exactly one class block contributes a nonzero.
        out_ref[...] += jnp.sum(picked, axis=1, keepdims=True)


def identity_loss(logits: jax.Array, y: jax.Array, *,
                  tile_budget_bytes: int = 4 << 20) -> jax.Array:
    """Returns the y-th component of each logit row, shape (n,)."""
    n, c = logits.shape
    itemsize = jnp.dtype(logits.dtype).itemsize
    tm, tc = _choose_tiles(n, c, itemsize, tile_budget_bytes)

    grid = (pl.cdiv(n, tm), pl.cdiv(c, tc))
    single_c_block = grid[1] == 1

    # Labels as an (n, 1) int32 column; no padding of either operand — Pallas
    # handles the partial edge blocks itself.
    y2d = y.astype(jnp.int32).reshape(n, 1)

    logits_spec = pl.BlockSpec((tm, tc), lambda i, k: (i, k))
    if grid[0] * grid[1] >= 3:
        # Deeper pipelining on the streamed operand keeps the DMA engine busy
        # (matters most on v7x's 3.2 TB/s HBM); skipped for tiny grids.
        logits_spec = pl.BlockSpec((tm, tc), lambda i, k: (i, k),
                                   pipeline_mode=pl.Buffered(3))

    out = pl.pallas_call(
        functools.partial(_identity_loss_kernel, tc=tc,
                          single_c_block=single_c_block),
        out_shape=jax.ShapeDtypeStruct((n, 1), logits.dtype),
        grid_spec=pltpu.PrefetchScalarGridSpec(
            num_scalar_prefetch=0,
            grid=grid,
            in_specs=[
                logits_spec,
                pl.BlockSpec((tm, 1), lambda i, k: (i, 0)),
            ],
            out_specs=pl.BlockSpec((tm, 1), lambda i, k: (i, 0)),
        ),
        compiler_params=pltpu.CompilerParams(
            # Rows are independent -> shard across TensorCores (2x on v7x);
            # class axis is a reduction into the resident output block.
            dimension_semantics=("parallel", "arbitrary"),
            # Explicit scoped-VMEM limit: load-bearing on v5e (16 MiB default),
            # comfortable headroom everywhere, <= v7x's 64 MiB physical VMEM.
            vmem_limit_bytes=48 * 1024 * 1024,
        ),
    )(logits, y2d)
    return out.reshape(n)


# TODO(synk): the `record()` bookkeeping (accuracy + strided loss take) only
# runs under autograd (loss.requires_grad) in PyTorch; it is not part of the
# returned forward value, so it is reproduced here in plain JAX for reference
# only, not inside the kernel.
def record_ref(loss, logits, y, yt):
    classes = y.size // yt.size
    offset = yt if y.size != yt.size else 0
    accuracy = jnp.argmax(logits[::classes], axis=1) == yt
    idx = jnp.arange(0, y.size, classes) + offset
    return loss[idx], accuracy


if __name__ == "__main__":
    key = jax.random.PRNGKey(0)
    k1, k2, k3, k4 = jax.random.split(key, 4)

    # Case 1: small f32 batch, single tile (grid = (1, 1), direct-write path).
    n, c = 8, 16
    logits = jax.random.normal(k1, (n, c), dtype=jnp.float32)
    y = jax.random.randint(k2, (n,), 0, c, dtype=jnp.int32)
    loss = identity_loss(logits, y)
    jax.block_until_ready(loss)
    ref = jnp.take_along_axis(logits, y[:, None], axis=1).reshape(n)
    assert loss.shape == (n,) and loss.dtype == logits.dtype
    assert jnp.array_equal(loss, ref), (loss, ref)

    # Case 2: bf16 logits (no upcast) + non-aligned n (partial edge row block,
    # two row blocks so the parallel axis actually splits).
    n2, c2 = 20, 10
    logits2 = jax.random.normal(k3, (n2, c2), dtype=jnp.bfloat16)
    y2 = jax.random.randint(k4, (n2,), 0, c2, dtype=jnp.int32)
    loss2 = identity_loss(logits2, y2)
    jax.block_until_ready(loss2)
    ref2 = jnp.take_along_axis(logits2, y2[:, None], axis=1).reshape(n2)
    assert loss2.dtype == jnp.bfloat16
    assert jnp.array_equal(loss2, ref2), (loss2, ref2)

    # Case 3: force the class-tiled accumulator path (row tiling + iota offset)
    # by shrinking the tile budget -> grid (2, 2), Buffered(3) engaged.
    n3, c3 = 16, 256
    logits3 = jax.random.normal(k1, (n3, c3), dtype=jnp.float32)
    y3 = jax.random.randint(k2, (n3,), 0, c3, dtype=jnp.int32)
    loss3 = identity_loss(logits3, y3, tile_budget_bytes=4096)
    jax.block_until_ready(loss3)
    ref3 = jnp.take_along_axis(logits3, y3[:, None], axis=1).reshape(n3)
    assert jnp.array_equal(loss3, ref3), (loss3, ref3)

    # Case 4: non-divisible class axis (partial class edge block, no jnp.pad)
    # plus multiple row blocks -> grid (3, 2).
    n4, c4 = 24, 300
    logits4 = jax.random.normal(k3, (n4, c4), dtype=jnp.float32)
    y4 = jax.random.randint(k4, (n4,), 0, c4, dtype=jnp.int32)
    loss4 = identity_loss(logits4, y4, tile_budget_bytes=8192)
    jax.block_until_ready(loss4)
    ref4 = jnp.take_along_axis(logits4, y4[:, None], axis=1).reshape(n4)
    assert jnp.array_equal(loss4, ref4), (loss4, ref4)

    print("KERNEL_OK")
</pallas_src>

<mosaic_0001>
module attributes {stable_mosaic.version = 11 : i64} {
  func.func @_identity_loss_kernel(%arg0: i32, %arg1: i32, %arg2: memref<8x16xf32, #tpu.memory_space<vmem>>, %arg3: memref<8x1xi32, #tpu.memory_space<vmem>>, %arg4: memref<8x1xf32, #tpu.memory_space<vmem>>) attributes {dimension_semantics = [#tpu.dimension_semantics<parallel>, #tpu.dimension_semantics<arbitrary>], iteration_bounds = array<i64: 1, 1>, scalar_prefetch = 0 : i64, scratch_operands = 0 : i64, tpu.core_type = #tpu.core_type<tc>, window_params = [{transform_indices = @transform_0, window_bounds = array<i64: 8, 16>}, {transform_indices = @transform_1, window_bounds = array<i64: 8, 1>}, {transform_indices = @transform_2, window_bounds = array<i64: 8, 1>}]} {
    %c0 = arith.constant 0 : index
    %c0_0 = arith.constant 0 : index
    %0 = vector.load %arg2[%c0, %c0_0] : memref<8x16xf32, #tpu.memory_space<vmem>>, vector<8x16xf32>
    %c0_1 = arith.constant 0 : index
    %c0_2 = arith.constant 0 : index
    %1 = vector.load %arg3[%c0_1, %c0_2] : memref<8x1xi32, #tpu.memory_space<vmem>>, vector<8x1xi32>
    %2 = tpu.iota {dimensions = array<i32: 1>} : vector<8x16xi32>
    %3 = vector.broadcast %1 : vector<8x1xi32> to vector<8x16xi32>
    %4 = arith.cmpi eq, %2, %3 : vector<8x16xi32>
    %cst = arith.constant 0.000000e+00 : f32
    %5 = vector.broadcast %cst : f32 to vector<8x16xf32>
    %6 = arith.select %4, %0, %5 : vector<8x16xi1>, vector<8x16xf32>
    %cst_3 = arith.constant dense<0.000000e+00> : vector<8xf32>
    %7 = vector.multi_reduction <add>, %6, %cst_3 [1] : vector<8x16xf32> to vector<8xf32>
    %8 = vector.shape_cast %7 : vector<8xf32> to vector<8x1xf32>
    %c0_4 = arith.constant 0 : index
    %c0_5 = arith.constant 0 : index
    %9 = vector.load %arg4[%c0_4, %c0_5] : memref<8x1xf32, #tpu.memory_space<vmem>>, vector<8x1xf32>
    tpu.vector_store %arg4[%c0_4, %c0_5], %8 {strides = array<i32>} : memref<8x1xf32, #tpu.memory_space<vmem>>, vector<8x1xf32>,
    return
  }
  func.func @transform_0(%arg0: i32, %arg1: i32) -> (i32, i32) {
    %c0_i32 = arith.constant 0 : i32
    return %arg0, %arg1 : i32, i32
  }
  func.func @transform_1(%arg0: i32, %arg1: i32) -> (i32, i32) {
    %c0_i32 = arith.constant 0 : i32
    %c0_i32_0 = arith.constant 0 : i32
    return %arg0, %c0_i32 : i32, i32
  }
  func.func @transform_2(%arg0: i32, %arg1: i32) -> (i32, i32) {
    %c0_i32 = arith.constant 0 : i32
    %c0_i32_0 = arith.constant 0 : i32
    return %arg0, %c0_i32 : i32, i32
  }
}

</mosaic_0001>

<llo_original>
// kernel: tpu_custom_call.1
$region0: #{tpu_custom_call.1}
  #allocation0 [shape = 'u32[]', space=smem, size = 0x4, offset = 0x4, fixed_abs, tag = 'smem constant byte address 0x4 - core index']
  #allocation1 [shape = 'u32[144,128]{1,0:T(1,128)}', space=vmem, size = 0x12000, scoped, tag = 'internal scratch']
  %s0 = inlined_call_operand.vmem [shape: f32[8,16], index: 0, kind: input, shape index: {}]
  %s1 = inlined_call_operand.vmem [shape: s32[8,1], index: 1, kind: input, shape index: {}]
  %s2 = inlined_call_operand.vmem [shape: f32[8,1], index: 2, kind: output, shape index: {}]
  %s3 = sld [smem:[#allocation0]]
  $region18: #{tpu_custom_call.1} parent=0
    _
  %s5 = ssub.s32 1, %s3
  %s6 = scalar_select 0, %s5, %s3
  // Predicated region
  $region2: #{tpu_custom_call.1} parent=0 // pred_check
    _
  $region3: #{tpu_custom_call.1} parent=0 // pred_check_branch
    %8 = sbr.rel (0) target = $region5
  $region4: #{tpu_custom_call.1} parent=0 // pred_region
    _
  $region5: #{tpu_custom_call.1} parent=0 // pred_fallthru
    _
  // Predicated region
  $region6: #{tpu_custom_call.1} parent=0 // pred_check
    _
  $region7: #{tpu_custom_call.1} parent=0 // pred_check_branch
    %10 = sbr.rel (0) target = $region9
  $region8: #{tpu_custom_call.1} parent=0 // pred_region
    _
  $region9: #{tpu_custom_call.1} parent=0 // pred_fallthru
    _
  %v11 = vld [vmem:[%s0] sm:$0xff]
  %v12 = vld [vmem:[%s1] sm:$0xff]
  %v13 = vlaneseq
  %v14 = vand.u32 %v13, 127
  %15 = vset.pattern.permute.xlu0 0
  %16 = vperm.xlu0 %15, %v12
  %v17 = vpop.permute.xlu0 %16
  %vm18 = vcmp.eq.s32.totalorder %v14, %v17
  %v19 = vsel %vm18, %v11, 0.0
  %vm20 = vcmask 130048
  %v21 = vsel %vm20, %v19, 0.0
  %22 = vadd.xlane.f32.xlu0 %v21
  %v23 = vpop.xlane.xlu0 %22
  %vm24 = vcmask 7168
  %25 = vst.msk [vmem:[%s2] sm:$0xff] %vm24, %v23
  // Predicated region
  $region10: #{tpu_custom_call.1} parent=0 // pred_check
    _
  $region11: #{tpu_custom_call.1} parent=0 // pred_check_branch
    %27 = sbr.rel (0) target = $region13
  $region12: #{tpu_custom_call.1} parent=0 // pred_region
    _
  $region13: #{tpu_custom_call.1} parent=0 // pred_fallthru
    _
  // Predicated region
  $region14: #{tpu_custom_call.1} parent=0 // pred_check
    _
  $region15: #{tpu_custom_call.1} parent=0 // pred_check_branch
    %29 = sbr.rel (0) target = $region17
  $region16: #{tpu_custom_call.1} parent=0 // pred_region
    _
  $region17: #{tpu_custom_call.1} parent=0 // pred_fallthru
    _

</llo_original>
